<compile_context>
chip_gen: v7x
topology: tpu7x:2x2x1
jax: 0.10.0
libtpu: 0.0.40
codegen_flags: <defaults>
</compile_context>

<pallas_src>
import jax
import jax.numpy as jnp
from jax import lax
from jax.experimental import pallas as pl
from jax.experimental.pallas import tpu as pltpu


# ---------------------------------------------------------------------------
# pltpu.roll convention guard
# ---------------------------------------------------------------------------
# We rely on pltpu.roll following np.roll semantics (positive shift moves elements
# toward higher indices).  Probe it once on-device so the tap shifts stay correct
# across Pallas versions.  Resolved at trace time (inputs are concrete), and warmed
# explicitly in __main__ before jit.  Single-backend processes only.
_ROLL_NP_CONVENTION = None


def _roll_is_np_convention():
    global _ROLL_NP_CONVENTION
    if _ROLL_NP_CONVENTION is None:
        def probe(x_ref, o_ref):
            o_ref[...] = pltpu.roll(x_ref[...], shift=1, axis=1)

        x = jax.lax.broadcasted_iota(jnp.float32, (8, 128), 1)
        y = pl.pallas_call(
            probe, out_shape=jax.ShapeDtypeStruct((8, 128), jnp.float32)
        )(x)
        # np.roll convention: out[0, 1] == x[0, 0] == 0.0
        _ROLL_NP_CONVENTION = bool(jax.device_get(y)[0, 1] == 0.0)
    return _ROLL_NP_CONVENTION


# ---------------------------------------------------------------------------
# Batch-block heuristic (images per grid step)
# ---------------------------------------------------------------------------
def _pick_batch_block(N, Cin, Cout, HWp, T):
    """Big enough to amortize the per-step overhead, small enough for a v7x-safe
    VMEM budget, and >= 2 grid blocks when N allows (megacore load balance)."""
    per_img_io = (Cin + Cout) * HWp * 4                 # x read + out write per image
    per_img_vmem = 2 * (Cin + Cout) * HWp * 4           # double-buffered in+out blocks
    fixed_vmem = T * Cin * HWp * 4 + Cout * T * Cin * 2 + 2 * HWp * 4 + Cout * 4
    cap_io = max(1, (512 * 1024) // per_img_io)         # target ~0.5 MiB IO per step
    cap_vmem = max(1, (20 * 1024 * 1024 - fixed_vmem) // per_img_vmem)
    cap = max(1, min(N, cap_io, cap_vmem))
    if N >= 2:
        cap = max(1, min(cap, N // 2))                  # keep >= 2 blocks (v7x 2 TCs)
    for d in range(cap, 0, -1):                         # nb must divide N exactly
        if N % d == 0:
            return d
    return 1


# ---------------------------------------------------------------------------
# Fused conv(3x3, s=1, p=1) + bias + ReLU forward
# ---------------------------------------------------------------------------
def conv_block_forward(x_nchw, weight, bias, *, kernel_size=3, padding=1):
    """ConvBlock forward: Conv2d(k, s=1, p, bias=True) + ReLU.

    x_nchw : (N, Cin, H, W) float32
    weight : (Cout, Cin, KH, KW) float32   (PyTorch Conv2d layout)
    bias   : (Cout,) float32
    returns: (N, Cout, H, W) float32
    """
    N, Cin, H, W = x_nchw.shape
    Cout = weight.shape[0]
    KH = KW = kernel_size
    T = KH * KW
    HW = H * W
    HWp = ((HW + 127) // 128) * 128          # lane-dense (last dim multiple of 128)

    # ---- host-side prep: free reshapes + tiny constant tensors --------------
    x_flat = x_nchw.reshape(N, Cin, HW)                  # free reshape (no copy)
    if HWp != HW:
        x_flat = jnp.pad(x_flat, ((0, 0), (0, 0), (0, HWp - HW)))

    # stacked tap weights: column block t*Cin:(t+1)*Cin holds tap t = (kh, kw)
    w_stacked = (
        jnp.transpose(weight, (0, 2, 3, 1)).reshape(Cout, T * Cin).astype(jnp.bfloat16)
    )
    b2 = bias.reshape(Cout, 1).astype(jnp.float32)

    # row/col coordinate planes (int32); padded tail marked out-of-range
    p = jnp.arange(HWp, dtype=jnp.int32)
    coords = jnp.stack(
        [jnp.where(p < HW, p // W, H), jnp.where(p < HW, p % W, W)], axis=0
    ).astype(jnp.int32)                                   # (2, HWp)

    # tap offsets (dy, dx) and flattened-lane roll shifts
    taps = [(kh - padding, kw - padding) for kh in range(KH) for kw in range(KW)]
    np_conv = _roll_is_np_convention()
    offs = [dy * W + dx for (dy, dx) in taps]
    shifts = [((-o) % HWp) if np_conv else (o % HWp) for o in offs]

    nb = _pick_batch_block(N, Cin, Cout, HWp, T)          # images per grid step
    grid_n = N // nb

    # bf16 scratch needs even Cin for packed-sublane-aligned row stores
    tap_dtype = jnp.bfloat16 if Cin % 2 == 0 else jnp.float32

    # ---- kernel: fused im2col (roll+mask -> K-stacked scratch) + 1 GEMM ------
    def kernel(coords_ref, x_ref, w_ref, b_ref, o_ref, tap_ref):
        rows = coords_ref[0:1, :]                         # (1, HWp) int32
        cols = coords_ref[1:2, :]                         # (1, HWp) int32

        # per-tap 0/1 edge masks (image-independent) computed once per grid step
        mask_mults = []
        for (dy, dx) in taps:
            if dy == 0 and dx == 0:
                mask_mults.append(None)
                continue
            cond = None
            if dy != 0:
                cond = (rows >= -dy) & (rows < H - dy)
            if dx != 0:
                c = (cols >= -dx) & (cols < W - dx)
                cond = c if cond is None else (cond & c)
            mask_mults.append(jnp.where(cond, 1.0, 0.0))  # (1, HWp) f32

        w_v = w_ref[...]                                  # (Cout, T*Cin) bf16
        b_v = b_ref[...]                                  # (Cout, 1) f32

        def conv_one_image(b, carry):
            xb = x_ref[b]                                 # (Cin, HWp)
            if xb.dtype != jnp.float32:
                xb = xb.astype(jnp.float32)
            for t, s in enumerate(shifts):                # static, 9 taps
                xt = xb if s == 0 else pltpu.roll(xb, shift=s, axis=1)   # XLU
                if mask_mults[t] is not None:
                    xt = xt * mask_mults[t]               # zero-fill edges (VPU)
                tap_ref[pl.ds(t * Cin, Cin), :] = xt.astype(tap_dtype)
            tv = tap_ref[...]
            if tv.dtype != jnp.bfloat16:
                tv = tv.astype(jnp.bfloat16)
            # single MXU matmul, K = 9*Cin, bf16 in / f32 acc
            acc = jnp.dot(w_v, tv, preferred_element_type=jnp.float32)
            # bias + ReLU in f32; (Cout, HWp) store is lane-dense (HWp % 128 == 0)
            o_ref[b] = jnp.maximum(acc + b_v, 0.0)
            return carry

        lax.fori_loop(0, nb, conv_one_image, 0, unroll=True)

    out = pl.pallas_call(
        kernel,
        out_shape=jax.ShapeDtypeStruct((N, Cout, HWp), jnp.float32),
        grid=(grid_n,),
        in_specs=[
            pl.BlockSpec((2, HWp), lambda n: (0, 0)),           # coord planes (once)
            pl.BlockSpec((nb, Cin, HWp), lambda n: (n, 0, 0)),  # activations
            pl.BlockSpec((Cout, T * Cin), lambda n: (0, 0)),    # stacked weights
            pl.BlockSpec((Cout, 1), lambda n: (0, 0)),          # bias
        ],
        out_specs=pl.BlockSpec((nb, Cout, HWp), lambda n: (n, 0, 0)),
        scratch_shapes=[pltpu.VMEM((T * Cin, HWp), tap_dtype)],  # K-stacked taps
        compiler_params=pltpu.CompilerParams(
            dimension_semantics=("parallel",),      # shard batch blocks across cores
            vmem_limit_bytes=32 * 1024 * 1024,      # safe on v7x's 64 MiB VMEM
        ),
        cost_estimate=pl.CostEstimate(
            flops=2 * N * HWp * T * Cin * Cout,
            transcendentals=0,
            bytes_accessed=(
                N * Cin * HWp * x_flat.dtype.itemsize   # activations (read once)
                + Cout * T * Cin * 2                    # stacked weights (bf16)
                + 2 * HWp * 4 + Cout * 4                # coords + bias
                + N * Cout * HWp * 4                    # output (f32)
            ),
        ),
    )(coords, x_flat, w_stacked, b2)

    if HWp != HW:
        out = out[:, :, :HW]
    return out.reshape(N, Cout, H, W)                    # free reshape (NCHW)


# ---------------------------------------------------------------------------
# Pure-JAX reference (for correctness check)
# ---------------------------------------------------------------------------
def conv_block_reference(x_nchw, weight, bias, *, padding=1):
    y = jax.lax.conv_general_dilated(
        x_nchw,
        weight,
        window_strides=(1, 1),
        padding=[(padding, padding), (padding, padding)],
        dimension_numbers=("NCHW", "OIHW", "NCHW"),
    )
    y = y + bias.reshape(1, -1, 1, 1)
    return jnp.maximum(y, 0.0)


if __name__ == "__main__":
    # ConvBlock(in_channels=4, out_channels=8)  (default: k=3, s=1, p=1, bias, act)
    N, Cin, Cout, H, W = 2, 4, 8, 16, 16
    KH = KW = 3

    key = jax.random.PRNGKey(0)
    kx, kw_, kb = jax.random.split(key, 3)

    x = jax.random.normal(kx, (N, Cin, H, W), dtype=jnp.float32)
    fan_in = Cin * KH * KW
    bound = 1.0 / (fan_in ** 0.5)
    weight = jax.random.uniform(kw_, (Cout, Cin, KH, KW), jnp.float32, -bound, bound)
    bias = jax.random.uniform(kb, (Cout,), jnp.float32, -bound, bound)

    _roll_is_np_convention()                 # resolve roll convention before jit
    fwd = jax.jit(conv_block_forward)
    y = jax.block_until_ready(fwd(x, weight, bias))

    y_ref = conv_block_reference(x, weight, bias)
    assert y.shape == (N, Cout, H, W)
    max_err = float(jnp.max(jnp.abs(y - y_ref)))
    # bf16 MXU inputs -> tolerance loosened vs f32 reference (documented contract)
    assert jnp.allclose(y, y_ref, atol=2e-2, rtol=2e-2), f"mismatch, max_err={max_err}"

    print("KERNEL_OK")
</pallas_src>

<mosaic_0001>
module attributes {stable_mosaic.version = 11 : i64} {
  func.func @probe(%arg0: memref<8x128xf32, #tpu.memory_space<vmem>>, %arg1: memref<8x128xf32, #tpu.memory_space<vmem>>) attributes {dimension_semantics = [], scalar_prefetch = 0 : i64, scratch_operands = 0 : i64, tpu.core_type = #tpu.core_type<tc>} {
    %c0 = arith.constant 0 : index
    %c0_0 = arith.constant 0 : index
    %0 = vector.load %arg0[%c0, %c0_0] : memref<8x128xf32, #tpu.memory_space<vmem>>, vector<8x128xf32>
    %c1_i32 = arith.constant 1 : i32
    %1 = tpu.dynamic_rotate %0 by %c1_i32 dim 1 : vector<8x128xf32>, i32 -> vector<8x128xf32>
    %c0_1 = arith.constant 0 : index
    %c0_2 = arith.constant 0 : index
    %2 = vector.load %arg1[%c0_1, %c0_2] : memref<8x128xf32, #tpu.memory_space<vmem>>, vector<8x128xf32>
    tpu.vector_store %arg1[%c0_1, %c0_2], %1 {strides = array<i32>} : memref<8x128xf32, #tpu.memory_space<vmem>>, vector<8x128xf32>,
    return
  }
}

</mosaic_0001>

<llo_original>
// kernel: tpu_custom_call.1
$region0: #{tpu_custom_call.1}
  #allocation0 [shape = 'u32[]', space=smem, size = 0x4, offset = 0x4, fixed_abs, tag = 'smem constant byte address 0x4 - core index']
  #allocation1 [shape = 'u32[144,128]{1,0:T(1,128)}', space=vmem, size = 0x12000, scoped, tag = 'internal scratch']
  %s0 = inlined_call_operand.hbm [shape: f32[8,128], index: 0, kind: input, shape index: {}]
  %s1 = inlined_call_operand.hbm [shape: f32[8,128], index: 1, kind: output, shape index: {}]
  %s2 = sld [smem:[#allocation0]]
  $region18: #{tpu_custom_call.1} parent=0
    _
  %s4 = ssub.s32 1, %s2
  %s5 = scalar_select 0, %s4, %s2
  $region1: #{tpu_custom_call.1} parent=0
    #allocation2 [shape = 'u8[4096]{0}', space=vmem, size = 0x1000, scoped, tag = 'input window, operand 0, single buffered']
    #allocation3 [shape = 's32[1]{0}', space=sflag, size = 0x4, scoped, tag = 'scoped memory for tpu_custom_call.1']
    #allocation4 [shape = 's32[1]{0}', space=sflag, size = 0x4, scoped, tag = 'scoped memory for tpu_custom_call.1']
    #allocation5 [shape = 'u8[4096]{0}', space=vmem, size = 0x1000, scoped, tag = 'output window, operand 0, single buffered']
    %6 = vsyncpa [#allocation3], 0
    %7 = vsyncpa [#allocation4], 0
    // Predicated region
    $region2: #{tpu_custom_call.1} parent=1 // pred_check
      _
    $region3: #{tpu_custom_call.1} parent=1 // pred_check_branch
      %9 = sbr.rel (0) target = $region5
    $region4: #{tpu_custom_call.1} parent=1 // pred_region
      %s11 = ssub.s32 128, 128
      %12 = vsyncadd [#allocation3], %s11
      %s14 = sshll.u32 [#allocation2], 4
      %s15 = int_to_ptr.vmem [resolvable:$true] %s14
      %17 = dma.hbm_to_vmem [thread:$0]  %s0, 128, %s15, [#allocation3]
    $region5: #{tpu_custom_call.1} parent=1 // pred_fallthru
      _
    // Predicated region
    $region6: #{tpu_custom_call.1} parent=1 // pred_check
      _
    $region7: #{tpu_custom_call.1} parent=1 // pred_check_branch
      %19 = sbr.rel (0) target = $region9
    $region8: #{tpu_custom_call.1} parent=1 // pred_region
      %20 = dma.done [#allocation3], 128
    $region9: #{tpu_custom_call.1} parent=1 // pred_fallthru
      _
    %v21 = vld [vmem:[#allocation2] sm:$0xff]
    %22 = vrot.lane.b32.xlu0 %v21, 1
    %v23 = vpop.permute.xlu0 %22
    %24 = vst [vmem:[#allocation5] sm:$0xff] %v23
    // Predicated region
    $region10: #{tpu_custom_call.1} parent=1 // pred_check
      _
    $region11: #{tpu_custom_call.1} parent=1 // pred_check_branch
      %26 = sbr.rel (0) target = $region13
    $region12: #{tpu_custom_call.1} parent=1 // pred_region
      %s28 = ssub.s32 128, 128
      %29 = vsyncadd [#allocation4], %s28
      %s31 = sshll.u32 [#allocation5], 4
      %s32 = int_to_ptr.vmem [resolvable:$true] %s31
      %34 = dma.vmem_to_hbm [thread:$0]  %s32, 128, %s1, [#allocation4]
    $region13: #{tpu_custom_call.1} parent=1 // pred_fallthru
      _
    // Predicated region
    $region14: #{tpu_custom_call.1} parent=1 // pred_check
      _
    $region15: #{tpu_custom_call.1} parent=1 // pred_check_branch
      %36 = sbr.rel (0) target = $region17
    $region16: #{tpu_custom_call.1} parent=1 // pred_region
      %37 = dma.done [#allocation4], 128
    $region17: #{tpu_custom_call.1} parent=1 // pred_fallthru
      _
    %38 = vsyncpa [#allocation3], 1
    %39 = vsyncpa [#allocation4], 1

</llo_original>
